<compile_context>
chip_gen: v7x
topology: tpu7x:2x2x1
jax: 0.10.0
libtpu: 0.0.40
codegen_flags: <defaults>
</compile_context>

<pallas_src>
import math

import jax
import jax.numpy as jnp
from jax.experimental import pallas as pl
from jax.experimental.pallas import tpu as pltpu

D_NUM, D_BIN = 6, 2
D_IN = D_NUM + D_BIN
D_MAIN = 32
D_BLOCK = 64
D_OUT = 1
EPS = 1e-5
LANE = 128           # lane-dense padded head output width
N_VEC = 10           # rows in the packed bias/vector slab

ENC_BLOCK_CAP = 4096                  # encoder rows per grid step (~4.5 MiB dbl-buffered)
MIX_BLOCK_MAX = 1024                  # upper bound on mixer rows per grid step
MIX_VMEM_BUDGET = 28 * 1024 * 1024    # target mixer VMEM use per step (conservative)
VMEM_LIMIT = 48 * 1024 * 1024         # explicit scoped-VMEM limit (< v7x 64 MiB physical)


def _round_up(n, m):
    return (n + m - 1) // m * m


# ---------------------------------------------------------------------------
# Pallas kernels
# ---------------------------------------------------------------------------
def encode_kernel(num_ref, bin_ref, wn_ref, wb_ref, b_ref, o_ref):
    # out = [num | bin] @ W + b, with num/bin kept as separate inputs so the
    # wrapper never materializes a concatenated copy of the candidate pool.
    o_ref[...] = (
        jnp.dot(num_ref[...], wn_ref[...], preferred_element_type=jnp.float32)
        + jnp.dot(bin_ref[...], wb_ref[...], preferred_element_type=jnp.float32)
        + b_ref[...])


def mixer_kernel(x_ref, k_ref, ck_ref, cy_ref, w1_ref, w2_ref, whead_ref,
                 vec_ref, out_ref):
    C, BM, D = ck_ref.shape
    DB = w1_ref.shape[1]

    x = x_ref[...]                          # (BM, D)
    k = k_ref[...]                          # (BM, D)
    ck = ck_ref[...]                        # (C, BM, D)   gathered candidate keys
    cy = cy_ref[...]                        # (C, BM, 1)   gathered candidate labels

    # static slices of the packed weight slabs
    w_T1 = w1_ref[:D, :]                    # (D, DB)
    w_b1 = w1_ref[D:, :]                    # (D, DB)
    w_T2 = w2_ref[:, :D]                    # (DB, D)
    w_b2 = w2_ref[:, D:]                    # (DB, D)
    b_T1 = vec_ref[0:1, :DB]
    b_b1 = vec_ref[1:2, :DB]
    w_lab = vec_ref[2:3, :D]
    b_lab = vec_ref[3:4, :D]
    ln1_g = vec_ref[4:5, :D]
    ln1_b = vec_ref[5:6, :D]
    b_b2 = vec_ref[6:7, :D]
    lnh_g = vec_ref[7:8, :D]
    lnh_b = vec_ref[8:9, :D]
    b_head = vec_ref[9:10, :]               # (1, LANE)

    # retrieval: numerically stable -||k - ck||^2 similarities, softmax over C
    # TODO(synk): per review, do max/exp/normalize in a lane-dense (C, BM)
    # layout and expand probs to (C, BM, 1) only for the weighted sums; kept in
    # the broadcast-ready layout here for lowering robustness (C is small).
    diff = k[None, :, :] - ck                                    # (C, BM, D)
    sim = -jnp.sum(diff * diff, axis=-1, keepdims=True)          # (C, BM, 1)
    m = jnp.max(sim, axis=0, keepdims=True)                      # (1, BM, 1)
    e = jnp.exp(sim - m)
    probs = e / jnp.sum(e, axis=0, keepdims=True)                # (C, BM, 1)

    # values = label_emb + T(k - ck); context_x = sum_c probs * values.
    # One flattened (C*BM, D) matmul; the probs-weighted context sum is applied
    # before the second (linear) T matmul, and the label embedding is folded in
    # analytically (sum_c probs = 1).
    diff2 = diff.reshape(C * BM, D)
    h = jnp.maximum(
        jnp.dot(diff2, w_T1, preferred_element_type=jnp.float32) + b_T1, 0.0)
    h = h.reshape(C, BM, DB)
    hw = jnp.sum(probs * h, axis=0)                              # (BM, DB)
    wy = jnp.sum(probs * cy, axis=0)                             # (BM, 1)
    context_x = (jnp.dot(hw, w_T2, preferred_element_type=jnp.float32)
                 + wy * w_lab + b_lab)                           # (BM, D)

    x = x + context_x

    def layer_norm(v, g, b):
        mu = jnp.mean(v, axis=-1, keepdims=True)
        var = jnp.mean((v - mu) * (v - mu), axis=-1, keepdims=True)
        return (v - mu) * jax.lax.rsqrt(var + EPS) * g + b

    # predictor block (prenorm residual MLP; dropout = identity in eval)
    z = layer_norm(x, ln1_g, ln1_b)
    h1 = jnp.maximum(
        jnp.dot(z, w_b1, preferred_element_type=jnp.float32) + b_b1, 0.0)
    x = x + jnp.dot(h1, w_b2, preferred_element_type=jnp.float32) + b_b2

    # head: LayerNorm -> ReLU -> Linear(d_main, d_out), lane-padded to 128 wide
    zh = jnp.maximum(layer_norm(x, lnh_g, lnh_b), 0.0)
    out_ref[...] = (jnp.dot(zh, whead_ref[...], preferred_element_type=jnp.float32)
                    + b_head)


# ---------------------------------------------------------------------------
# Wrappers
# ---------------------------------------------------------------------------
def _encode_rows(x_num, x_bin, w_num, w_bin, bias):
    """Gridded row encoder: out = [num | bin] @ [w_num; w_bin] + bias."""
    n = x_num.shape[0]
    d_o = w_num.shape[1]
    bm = min(ENC_BLOCK_CAP, _round_up(max(n, 1), 8))
    grid = pl.cdiv(n, bm)
    const = lambda i: (0, 0)
    cost = pl.CostEstimate(
        flops=2 * n * D_IN * d_o,
        transcendentals=0,
        bytes_accessed=4 * (n * D_IN + D_IN * d_o + d_o + n * d_o))
    return pl.pallas_call(
        encode_kernel,
        out_shape=jax.ShapeDtypeStruct((n, d_o), jnp.float32),
        grid=(grid,),
        in_specs=[pl.BlockSpec((bm, D_NUM), lambda i: (i, 0)),
                  pl.BlockSpec((bm, D_BIN), lambda i: (i, 0)),
                  pl.BlockSpec((D_NUM, d_o), const),
                  pl.BlockSpec((D_BIN, d_o), const),
                  pl.BlockSpec((1, d_o), const)],
        out_specs=pl.BlockSpec((bm, d_o), lambda i: (i, 0)),
        compiler_params=pltpu.CompilerParams(
            dimension_semantics=("parallel",),
            vmem_limit_bytes=VMEM_LIMIT),
        cost_estimate=cost,
    )(x_num, x_bin, w_num, w_bin, bias)


def _mixer_block_rows(batch, context_size):
    """Mixer rows per grid step from a VMEM budget (function of context_size)."""
    C = context_size
    # Worst-case f32 bytes per query row per step, assuming 128-lane padding of
    # every (C, bm, small-minor) tile: double-buffered ck + cy input blocks plus
    # the big in-kernel intermediates (diff, h, probs).  Conservative on purpose
    # so a tile that fits v5e/v6e also fits v7x (64 MiB physical VMEM).
    per_row = 4 * (2 * C * LANE            # ck pipeline buffers (x2)
                   + 2 * C * LANE          # cy pipeline buffers (x2)
                   + 3 * C * LANE          # diff / h / probs intermediates
                   + 4 * D_MAIN + 2 * LANE)
    bm = MIX_VMEM_BUDGET // max(per_row, 1)
    bm = max(8, min(MIX_BLOCK_MAX, bm) // 8 * 8)
    rows = _round_up(max(batch, 1), 8)
    bm = min(bm, rows)
    # keep the grid >= 2 when there is enough work (feeds both v7x TensorCores)
    if rows > 256 and rows <= bm:
        bm = _round_up(pl.cdiv(rows, 2), 8)
    return bm


def _pack_weights(p):
    """Pack the small weights/biases into 4 slabs (fewer DMA descriptors)."""
    w1 = jnp.concatenate([p['w_T1'], p['w_b1']], axis=0)       # (2*D_MAIN, D_BLOCK)
    w2 = jnp.concatenate([p['w_T2'], p['w_b2']], axis=1)       # (D_BLOCK, 2*D_MAIN)
    whead = jnp.zeros((D_MAIN, LANE), jnp.float32).at[:, :D_OUT].set(p['w_head'])

    def row(v):
        v = v.reshape(1, -1)
        return jnp.pad(v, ((0, 0), (0, LANE - v.shape[1])))

    vec = jnp.concatenate([
        row(p['b_T1']),    # 0
        row(p['b_b1']),    # 1
        row(p['w_lab']),   # 2
        row(p['b_lab']),   # 3
        row(p['ln1_g']),   # 4
        row(p['ln1_b']),   # 5
        row(p['b_b2']),    # 6
        row(p['lnh_g']),   # 7
        row(p['lnh_b']),   # 8
        row(p['b_head']),  # 9
    ], axis=0)                                                  # (N_VEC, LANE)
    return w1, w2, whead, vec


def tabr_forward(params, q_num, q_bin, c_num, c_bin, cand_y, context_size):
    B = q_num.shape[0]
    C = context_size

    # --- encoders ---------------------------------------------------------
    # Queries: fused [x | k] in one matmul.  Candidates: k-only weights
    # (candidate x is never used downstream), no concat/pad pass over the pool.
    # NOTE: k = feats @ (W@W_K) + (b@W_K + b_K) is an f32 reassociation of the
    # reference (feats@W + b) @ W_K + b_K; fine at 1e-3 tolerance.
    w_lin, b_lin, w_K, b_K = (params['w_lin'], params['b_lin'],
                              params['w_K'], params['b_K'])
    w_k_num = w_lin[:D_NUM] @ w_K
    w_k_bin = w_lin[D_NUM:] @ w_K
    b_k = b_lin @ w_K + b_K

    wq_num = jnp.concatenate([w_lin[:D_NUM], w_k_num], axis=1)   # (D_NUM, 2*D_MAIN)
    wq_bin = jnp.concatenate([w_lin[D_NUM:], w_k_bin], axis=1)   # (D_BIN, 2*D_MAIN)
    bq = jnp.concatenate([b_lin, b_k], axis=1)                   # (1, 2*D_MAIN)

    enc_q = _encode_rows(q_num, q_bin, wq_num, wq_bin, bq)       # (B, 2*D_MAIN)
    x, k = enc_q[:, :D_MAIN], enc_q[:, D_MAIN:]
    cand_k = _encode_rows(c_num, c_bin, w_k_num, w_k_bin, b_k)   # (N_cand, D_MAIN)

    # --- faiss IndexFlatL2 equivalent (eval mode: no self-exclusion) -------
    # TODO(synk): replace with a streaming Pallas top-C kernel (grid over
    # candidate chunks, per-query running top-C in VMEM) for training-set-sized
    # candidate pools; the dense distance matrix + lax.top_k dominate there.
    d2 = (jnp.sum(k * k, axis=-1, keepdims=True)
          - 2.0 * (k @ cand_k.T)
          + jnp.sum(cand_k * cand_k, axis=-1)[None, :])
    _, idx = jax.lax.top_k(-d2, C)                               # (B, C)

    # Gather directly in context-major order (no (B, C, D) transpose pass).
    # TODO(synk): an in-kernel gather (scalar-prefetched idx + manual DMA from
    # cand_k kept in HBM) would avoid materializing this intermediate at all.
    ck = jnp.take(cand_k, idx.T, axis=0)                         # (C, B, D_MAIN)
    cy = jnp.take(cand_y, idx.T, axis=0)[..., None]              # (C, B, 1)

    bm = _mixer_block_rows(B, C)
    grid = pl.cdiv(B, bm)
    w1, w2, whead, vec = _pack_weights(params)
    const = lambda i: (0, 0)

    cost = pl.CostEstimate(
        flops=2 * B * (C * D_MAIN * D_BLOCK + D_BLOCK * D_MAIN
                       + 2 * D_MAIN * D_BLOCK + D_MAIN * LANE),
        transcendentals=B * C,
        bytes_accessed=4 * (B * 2 * D_MAIN + C * B * (D_MAIN + 1) + B * LANE
                            + 4 * D_MAIN * D_BLOCK + N_VEC * LANE
                            + D_MAIN * LANE))

    out = pl.pallas_call(
        mixer_kernel,
        out_shape=jax.ShapeDtypeStruct((B, LANE), jnp.float32),
        grid=(grid,),
        in_specs=[
            pl.BlockSpec((bm, D_MAIN), lambda i: (i, 0)),              # x
            pl.BlockSpec((bm, D_MAIN), lambda i: (i, 0)),              # k
            pl.BlockSpec((C, bm, D_MAIN), lambda i: (0, i, 0)),        # context keys
            pl.BlockSpec((C, bm, 1), lambda i: (0, i, 0)),             # context labels
            pl.BlockSpec((2 * D_MAIN, D_BLOCK), const),                # w_T1 | w_b1
            pl.BlockSpec((D_BLOCK, 2 * D_MAIN), const),                # w_T2 | w_b2
            pl.BlockSpec((D_MAIN, LANE), const),                       # padded head W
            pl.BlockSpec((N_VEC, LANE), const),                        # packed biases
        ],
        out_specs=pl.BlockSpec((bm, LANE), lambda i: (i, 0)),
        compiler_params=pltpu.CompilerParams(
            dimension_semantics=("parallel",),
            vmem_limit_bytes=VMEM_LIMIT),
        cost_estimate=cost,
    )(x, k, ck, cy, w1, w2, whead, vec)
    # TODO(synk): for B >> 128, pack head outputs 128-per-row via an in-kernel
    # transpose instead of one lane-padded row per query (128x fewer out bytes).
    return out[:B, :D_OUT]


# ---------------------------------------------------------------------------
# Pure-JAX reference (mirrors the PyTorch forward for validation)
# ---------------------------------------------------------------------------
def _layer_norm_ref(v, g, b):
    mu = v.mean(-1, keepdims=True)
    var = ((v - mu) ** 2).mean(-1, keepdims=True)
    return (v - mu) / jnp.sqrt(var + EPS) * g + b


def tabr_forward_ref(params, q_num, q_bin, c_num, c_bin, cand_y, context_size):
    def enc(feats):
        x = feats @ params['w_lin'] + params['b_lin']
        return x, x @ params['w_K'] + params['b_K']

    x, k = enc(jnp.concatenate([q_num, q_bin], axis=1))
    _, cand_k = enc(jnp.concatenate([c_num, c_bin], axis=1))

    d2 = (jnp.sum(k * k, -1, keepdims=True) - 2.0 * (k @ cand_k.T)
          + jnp.sum(cand_k * cand_k, -1)[None, :])
    _, idx = jax.lax.top_k(-d2, context_size)
    context_k = jnp.take(cand_k, idx, axis=0)
    context_y = jnp.take(cand_y, idx, axis=0)

    sim = (-jnp.sum(k * k, -1, keepdims=True)
           + 2.0 * jnp.einsum('bd,bcd->bc', k, context_k)
           - jnp.sum(context_k ** 2, -1))
    probs = jax.nn.softmax(sim, axis=-1)

    y_emb = context_y[..., None] * params['w_lab'][0][None, None, :] + params['b_lab'][0]
    diff = k[:, None, :] - context_k
    h = jax.nn.relu(jnp.einsum('bcd,de->bce', diff, params['w_T1']) + params['b_T1'][0])
    t = jnp.einsum('bce,ed->bcd', h, params['w_T2'])
    values = y_emb + t
    context_x = jnp.einsum('bc,bcd->bd', probs, values)
    x = x + context_x

    z = _layer_norm_ref(x, params['ln1_g'], params['ln1_b'])
    h1 = jax.nn.relu(z @ params['w_b1'] + params['b_b1'])
    x = x + h1 @ params['w_b2'] + params['b_b2']

    zh = jax.nn.relu(_layer_norm_ref(x, params['lnh_g'], params['lnh_b']))
    return zh @ params['w_head'] + params['b_head']


# ---------------------------------------------------------------------------
# Deterministic parameter init (shapes from TabR.__init__)
# ---------------------------------------------------------------------------
def init_params(key):
    ks = jax.random.split(key, 15)

    def u(k, shape, bound):
        return jax.random.uniform(k, shape, jnp.float32, -bound, bound)

    p = {}
    p['w_lin'] = u(ks[0], (D_IN, D_MAIN), 1 / math.sqrt(D_IN))
    p['b_lin'] = u(ks[1], (1, D_MAIN), 1 / math.sqrt(D_IN))
    p['w_K'] = u(ks[2], (D_MAIN, D_MAIN), 1 / math.sqrt(D_MAIN))
    p['b_K'] = u(ks[3], (1, D_MAIN), 1 / math.sqrt(D_MAIN))
    # label_encoder = Linear(1, d_main), reset_parameters: U(-1/sqrt(2), 1/sqrt(2))
    p['w_lab'] = u(ks[4], (1, D_MAIN), 1 / math.sqrt(2.0))
    p['b_lab'] = u(ks[5], (1, D_MAIN), 1 / math.sqrt(2.0))
    # T = Linear(d_main, d_block) -> ReLU -> Dropout -> Linear(d_block, d_main, bias=False)
    p['w_T1'] = u(ks[6], (D_MAIN, D_BLOCK), 1 / math.sqrt(D_MAIN))
    p['b_T1'] = u(ks[7], (1, D_BLOCK), 1 / math.sqrt(D_MAIN))
    p['w_T2'] = u(ks[8], (D_BLOCK, D_MAIN), 1 / math.sqrt(D_BLOCK))
    # blocks1[0]: LayerNorm, Linear, ReLU, Dropout, Linear, Dropout
    p['ln1_g'] = jnp.ones((1, D_MAIN), jnp.float32)
    p['ln1_b'] = jnp.zeros((1, D_MAIN), jnp.float32)
    p['w_b1'] = u(ks[9], (D_MAIN, D_BLOCK), 1 / math.sqrt(D_MAIN))
    p['b_b1'] = u(ks[10], (1, D_BLOCK), 1 / math.sqrt(D_MAIN))
    p['w_b2'] = u(ks[11], (D_BLOCK, D_MAIN), 1 / math.sqrt(D_BLOCK))
    p['b_b2'] = u(ks[12], (1, D_MAIN), 1 / math.sqrt(D_BLOCK))
    # head: LayerNorm, ReLU, Linear(d_main, 1)
    p['lnh_g'] = jnp.ones((1, D_MAIN), jnp.float32)
    p['lnh_b'] = jnp.zeros((1, D_MAIN), jnp.float32)
    p['w_head'] = u(ks[13], (D_MAIN, D_OUT), 1 / math.sqrt(D_MAIN))
    p['b_head'] = u(ks[14], (1, D_OUT), 1 / math.sqrt(D_MAIN))
    return p


if __name__ == "__main__":
    key = jax.random.PRNGKey(0)
    kp, k1, k2, k3, k4, k5 = jax.random.split(key, 6)
    params = init_params(kp)

    B, N_CAND, CTX = 8, 16, 4
    q_num = jax.random.normal(k1, (B, D_NUM), jnp.float32)
    q_bin = (jax.random.uniform(k2, (B, D_BIN)) > 0.5).astype(jnp.float32)
    c_num = jax.random.normal(k3, (N_CAND, D_NUM), jnp.float32)
    c_bin = (jax.random.uniform(k4, (N_CAND, D_BIN)) > 0.5).astype(jnp.float32)
    cand_y = jax.random.normal(k5, (N_CAND,), jnp.float32)

    out = tabr_forward(params, q_num, q_bin, c_num, c_bin, cand_y, CTX)
    out = jax.block_until_ready(out)

    ref = tabr_forward_ref(params, q_num, q_bin, c_num, c_bin, cand_y, CTX)
    assert out.shape == (B, D_OUT)
    max_err = float(jnp.max(jnp.abs(out - ref)))
    assert max_err < 1e-3, f"kernel/reference mismatch: {max_err}"
    print("KERNEL_OK")
</pallas_src>

<mosaic_0001>
module attributes {stable_mosaic.version = 11 : i64} {
  func.func @encode_kernel(%arg0: i32, %arg1: memref<8x6xf32, #tpu.memory_space<vmem>>, %arg2: memref<8x2xf32, #tpu.memory_space<vmem>>, %arg3: memref<6x64xf32, #tpu.memory_space<vmem>>, %arg4: memref<2x64xf32, #tpu.memory_space<vmem>>, %arg5: memref<1x64xf32, #tpu.memory_space<vmem>>, %arg6: memref<8x64xf32, #tpu.memory_space<vmem>>) attributes {dimension_semantics = [#tpu.dimension_semantics<parallel>], iteration_bounds = array<i64: 1>, scalar_prefetch = 0 : i64, scratch_operands = 0 : i64, tpu.core_type = #tpu.core_type<tc>, window_params = [{transform_indices = @transform_0, window_bounds = array<i64: 8, 6>}, {transform_indices = @transform_1, window_bounds = array<i64: 8, 2>}, {pipeline_mode = #tpu.pipeline_mode<synchronous>, transform_indices = @transform_2, window_bounds = array<i64: 6, 64>}, {pipeline_mode = #tpu.pipeline_mode<synchronous>, transform_indices = @transform_3, window_bounds = array<i64: 2, 64>}, {pipeline_mode = #tpu.pipeline_mode<synchronous>, transform_indices = @transform_4, window_bounds = array<i64: 1, 64>}, {transform_indices = @transform_5, window_bounds = array<i64: 8, 64>}]} {
    %c0 = arith.constant 0 : index
    %c0_0 = arith.constant 0 : index
    %0 = vector.load %arg1[%c0, %c0_0] : memref<8x6xf32, #tpu.memory_space<vmem>>, vector<8x6xf32>
    %c0_1 = arith.constant 0 : index
    %c0_2 = arith.constant 0 : index
    %1 = vector.load %arg3[%c0_1, %c0_2] : memref<6x64xf32, #tpu.memory_space<vmem>>, vector<6x64xf32>
    %cst = arith.constant dense<0.000000e+00> : vector<8x64xf32>
    %2 = tpu.matmul %0, %1, %cst {dimension_numbers = #tpu.dot_dimension_numbers<[1], [0], [0], [1], [0, 0, 1, 1], [], []>} : vector<8x6xf32>, vector<6x64xf32>, vector<8x64xf32> -> vector<8x64xf32>
    %c0_3 = arith.constant 0 : index
    %c0_4 = arith.constant 0 : index
    %3 = vector.load %arg2[%c0_3, %c0_4] : memref<8x2xf32, #tpu.memory_space<vmem>>, vector<8x2xf32>
    %c0_5 = arith.constant 0 : index
    %c0_6 = arith.constant 0 : index
    %4 = vector.load %arg4[%c0_5, %c0_6] : memref<2x64xf32, #tpu.memory_space<vmem>>, vector<2x64xf32>
    %cst_7 = arith.constant dense<0.000000e+00> : vector<8x64xf32>
    %5 = tpu.matmul %3, %4, %cst_7 {dimension_numbers = #tpu.dot_dimension_numbers<[1], [0], [0], [1], [0, 0, 1, 1], [], []>} : vector<8x2xf32>, vector<2x64xf32>, vector<8x64xf32> -> vector<8x64xf32>
    %6 = arith.addf %2, %5 : vector<8x64xf32>
    %c0_8 = arith.constant 0 : index
    %c0_9 = arith.constant 0 : index
    %7 = vector.load %arg5[%c0_8, %c0_9] : memref<1x64xf32, #tpu.memory_space<vmem>>, vector<1x64xf32>
    %8 = vector.broadcast %7 : vector<1x64xf32> to vector<8x64xf32>
    %9 = arith.addf %6, %8 : vector<8x64xf32>
    %c0_10 = arith.constant 0 : index
    %c0_11 = arith.constant 0 : index
    %10 = vector.load %arg6[%c0_10, %c0_11] : memref<8x64xf32, #tpu.memory_space<vmem>>, vector<8x64xf32>
    tpu.vector_store %arg6[%c0_10, %c0_11], %9 {strides = array<i32>} : memref<8x64xf32, #tpu.memory_space<vmem>>, vector<8x64xf32>,
    return
  }
  func.func @transform_0(%arg0: i32) -> (i32, i32) {
    %c0_i32 = arith.constant 0 : i32
    %c0_i32_0 = arith.constant 0 : i32
    return %arg0, %c0_i32 : i32, i32
  }
  func.func @transform_1(%arg0: i32) -> (i32, i32) {
    %c0_i32 = arith.constant 0 : i32
    %c0_i32_0 = arith.constant 0 : i32
    return %arg0, %c0_i32 : i32, i32
  }
  func.func @transform_2(%arg0: i32) -> (i32, i32) {
    %c0_i32 = arith.constant 0 : i32
    %c0_i32_0 = arith.constant 0 : i32
    %c0_i32_1 = arith.constant 0 : i32
    return %c0_i32, %c0_i32_0 : i32, i32
  }
  func.func @transform_3(%arg0: i32) -> (i32, i32) {
    %c0_i32 = arith.constant 0 : i32
    %c0_i32_0 = arith.constant 0 : i32
    %c0_i32_1 = arith.constant 0 : i32
    return %c0_i32, %c0_i32_0 : i32, i32
  }
  func.func @transform_4(%arg0: i32) -> (i32, i32) {
    %c0_i32 = arith.constant 0 : i32
    %c0_i32_0 = arith.constant 0 : i32
    %c0_i32_1 = arith.constant 0 : i32
    return %c0_i32, %c0_i32_0 : i32, i32
  }
  func.func @transform_5(%arg0: i32) -> (i32, i32) {
    %c0_i32 = arith.constant 0 : i32
    %c0_i32_0 = arith.constant 0 : i32
    return %arg0, %c0_i32 : i32, i32
  }
}

</mosaic_0001>

<llo_original>
// kernel: tpu_custom_call.1
$region0: #{tpu_custom_call.1}
  #allocation0 [shape = 'u32[]', space=smem, size = 0x4, offset = 0x4, fixed_abs, tag = 'smem constant byte address 0x4 - core index']
  #allocation1 [shape = 'u32[144,128]{1,0:T(1,128)}', space=vmem, size = 0x12000, scoped, tag = 'internal scratch']
  %s0 = inlined_call_operand.vmem [shape: f32[8,6], index: 0, kind: input, shape index: {}]
  %s1 = inlined_call_operand.vmem [shape: f32[8,2], index: 1, kind: input, shape index: {}]
  %s2 = inlined_call_operand.vmem [shape: f32[6,64], index: 2, kind: input, shape index: {}]
  %s3 = inlined_call_operand.vmem [shape: f32[2,64], index: 3, kind: input, shape index: {}]
  %s4 = inlined_call_operand.vmem [shape: f32[1,64], index: 4, kind: input, shape index: {}]
  %s5 = inlined_call_operand.hbm [shape: f32[8,64], index: 5, kind: output, shape index: {}]
  %s6 = sld [smem:[#allocation0]]
  $region30: #{tpu_custom_call.1} parent=0
    _
  %s8 = ssub.s32 1, %s6
  %s9 = scalar_select 0, %s8, %s6
  $region1: #{tpu_custom_call.1} parent=0
    #allocation2 [shape = 'u8[4096]{0}', space=vmem, size = 0x1000, scoped, tag = 'output window, operand 0, single buffered']
    #allocation3 [shape = 's32[1]{0}', space=sflag, size = 0x4, scoped, tag = 'scoped memory for tpu_custom_call.1']
    %10 = vsyncpa [#allocation3], 0
    // Predicated region
    $region2: #{tpu_custom_call.1} parent=1 // pred_check
      _
    $region3: #{tpu_custom_call.1} parent=1 // pred_check_branch
      %12 = sbr.rel (0) target = $region5
    $region4: #{tpu_custom_call.1} parent=1 // pred_region
      _
    $region5: #{tpu_custom_call.1} parent=1 // pred_fallthru
      _
    // Predicated region
    $region6: #{tpu_custom_call.1} parent=1 // pred_check
      _
    $region7: #{tpu_custom_call.1} parent=1 // pred_check_branch
      %14 = sbr.rel (0) target = $region9
    $region8: #{tpu_custom_call.1} parent=1 // pred_region
      _
    $region9: #{tpu_custom_call.1} parent=1 // pred_fallthru
      _
    // Predicated region
    $region10: #{tpu_custom_call.1} parent=1 // pred_check
      _
    $region11: #{tpu_custom_call.1} parent=1 // pred_check_branch
      %16 = sbr.rel (0) target = $region13
    $region12: #{tpu_custom_call.1} parent=1 // pred_region
      _
    $region13: #{tpu_custom_call.1} parent=1 // pred_fallthru
      _
    // Predicated region
    $region14: #{tpu_custom_call.1} parent=1 // pred_check
      _
    $region15: #{tpu_custom_call.1} parent=1 // pred_check_branch
      %18 = sbr.rel (0) target = $region17
    $region16: #{tpu_custom_call.1} parent=1 // pred_region
      _
    $region17: #{tpu_custom_call.1} parent=1 // pred_fallthru
      _
    // Predicated region
    $region18: #{tpu_custom_call.1} parent=1 // pred_check
      _
    $region19: #{tpu_custom_call.1} parent=1 // pred_check_branch
      %20 = sbr.rel (0) target = $region21
    $region20: #{tpu_custom_call.1} parent=1 // pred_region
      _
    $region21: #{tpu_custom_call.1} parent=1 // pred_fallthru
      _
    %v21 = vld [vmem:[%s0] sm:$0xff]
    %v22 = vld [vmem:[%s2] sm:$0x3f]
    %v23 = vld [vmem:[%s1] sm:$0xff]
    %v24 = vld [vmem:[%s3] sm:$0x3]
    %vm25 = vcmask 15360
    %v27 = vsel %vm25, %v23, 0
    %vm29 = vcmask 1041408
    %v31 = vsel %vm29, %v24, 0
    %33 = vmatprep.subr.mxu0 0.0
    %34 = vmatpush1.msra.mxu0 %v31
    %35 = vmatprep.subr.mxu0 0.0
    %36 = vmatpush1.msra.mxu0 0.0
    %37 = vmatprep.subr.mxu0 0.0
    %38 = vmatpush1.msra.mxu0 0.0
    %39 = vmatprep.subr.mxu0 0.0
    %40 = vmatpush1.msra.mxu0 0.0
    %41 = vmatprep.subr.mxu0 0.0
    %42 = vmatpush1.msra.mxu0 0.0
    %43 = vmatprep.subr.mxu0 0.0
    %44 = vmatpush1.msra.mxu0 0.0
    %45 = vmatprep.subr.mxu0 0.0
    %46 = vmatpush1.msra.mxu0 0.0
    %47 = vmatprep.subr.mxu0 0.0
    %48 = vmatpush1.msra.mxu0 0.0
    %49 = vmatprep.subr.mxu0 0.0
    %50 = vmatpush1.msra.mxu0 0.0
    %51 = vmatprep.subr.mxu0 0.0
    %52 = vmatpush1.msra.mxu0 0.0
    %53 = vmatprep.subr.mxu0 0.0
    %54 = vmatpush1.msra.mxu0 0.0
    %55 = vmatprep.subr.mxu0 0.0
    %56 = vmatpush1.msra.mxu0 0.0
    %57 = vmatprep.subr.mxu0 0.0
    %58 = vmatpush1.msra.mxu0 0.0
    %59 = vmatprep.subr.mxu0 0.0
    %60 = vmatpush1.msra.mxu0 0.0
    %61 = vmatprep.subr.mxu0 0.0
    %62 = vmatpush1.msra.mxu0 0.0
    %63 = vmatprep.subr.mxu0 0.0
    %64 = vmatpush1.msra.mxu0 0.0
    %65 = vmatprep.subr.mxu0 0.0
    %66 = vmatpush1.msra.mxu0 0.0
    %67 = vmatprep.subr.mxu0 0.0
    %68 = vmatpush1.msra.mxu0 0.0
    %69 = vmatprep.subr.mxu0 0.0
    %70 = vmatpush1.msra.mxu0 0.0
    %71 = vmatprep.subr.mxu0 0.0
    %72 = vmatpush1.msra.mxu0 0.0
    %73 = vmatprep.subr.mxu0 0.0
    %74 = vmatpush1.msra.mxu0 0.0
    %75 = vmatprep.subr.mxu0 0.0
    %76 = vmatpush1.msra.mxu0 0.0
    %77 = vmatprep.subr.mxu0 0.0
    %78 = vmatpush1.msra.mxu0 0.0
    %79 = vmatprep.subr.mxu0 0.0
    %80 = vmatpush1.msra.mxu0 0.0
    %81 = vmatprep.subr.mxu0 0.0
    %82 = vmatpush1.msra.mxu0 0.0
    %83 = vmatprep.subr.mxu0 0.0
    %84 = vmatpush1.msra.mxu0 0.0
    %85 = vmatprep.subr.mxu0 0.0
    %86 = vmatpush1.msra.mxu0 0.0
    %87 = vmatprep.subr.mxu0 0.0
    %88 = vmatpush1.msra.mxu0 0.0
    %89 = vmatprep.subr.mxu0 0.0
    %90 = vmatpush1.msra.mxu0 0.0
    %91 = vmatprep.subr.mxu0 0.0
    %92 = vmatpush1.msra.mxu0 0.0
    %93 = vmatprep.subr.mxu0 0.0
    %94 = vmatpush1.msra.mxu0 0.0
    %95 = vmatprep.subr.mxu0 0.0
    %96 = vmatpush1.msra.mxu0 0.0
    %97 = vmatprep.mubr.f32.mxu0 0.0
    %98 = vmatmul.mubr.f32.gmra.mrb[0].mxu0 %v27
    %v99 = vpop.f32.mrb[0].mxu0
    %v100 = vadd.f32 0.0, %v99
    %v101 = vpop.f32.mrb[0].mxu0
    %102 = vdwg.mxu0
    %vm103 = vcmask 48128
    %v105 = vsel %vm103, %v21, 0
    %vm107 = vcmask 1045504
    %v109 = vsel %vm107, %v22, 0
    %111 = vmatprep.subr.mxu0 0.0
    %112 = vmatpush1.msra.mxu0 %v109
    %113 = vmatprep.subr.mxu0 0.0
    %114 = vmatpush1.msra.mxu0 0.0
    %115 = vmatprep.subr.mxu0 0.0
    %116 = vmatpush1.msra.mxu0 0.0
    %117 = vmatprep.subr.mxu0 0.0
    %118 = vmatpush1.msra.mxu0 0.0
    %119 = vmatprep.subr.mxu0 0.0
    %120 = vmatpush1.msra.mxu0 0.0
    %121 = vmatprep.subr.mxu0 0.0
    %122 = vmatpush1.msra.mxu0 0.0
    %123 = vmatprep.subr.mxu0 0.0
    %124 = vmatpush1.msra.mxu0 0.0
    %125 = vmatprep.subr.mxu0 0.0
    %126 = vmatpush1.msra.mxu0 0.0
    %127 = vmatprep.subr.mxu0 0.0
    %128 = vmatpush1.msra.mxu0 0.0
    %129 = vmatprep.subr.mxu0 0.0
    %130 = vmatpush1.msra.mxu0 0.0
    %131 = vmatprep.subr.mxu0 0.0
    %132 = vmatpush1.msra.mxu0 0.0
    %133 = vmatprep.subr.mxu0 0.0
    %134 = vmatpush1.msra.mxu0 0.0
    %135 = vmatprep.subr.mxu0 0.0
    %136 = vmatpush1.msra.mxu0 0.0
    %137 = vmatprep.subr.mxu0 0.0
    %138 = vmatpush1.msra.mxu0 0.0
    %139 = vmatprep.subr.mxu0 0.0
    %140 = vmatpush1.msra.mxu0 0.0
    %141 = vmatprep.subr.mxu0 0.0
    %142 = vmatpush1.msra.mxu0 0.0
    %143 = vmatprep.subr.mxu0 0.0
    %144 = vmatpush1.msra.mxu0 0.0
    %145 = vmatprep.subr.mxu0 0.0
    %146 = vmatpush1.msra.mxu0 0.0
    %147 = vmatprep.subr.mxu0 0.0
    %148 = vmatpush1.msra.mxu0 0.0
    %149 = vmatprep.subr.mxu0 0.0
    %150 = vmatpush1.msra.mxu0 0.0
    %151 = vmatprep.subr.mxu0 0.0
    %152 = vmatpush1.msra.mxu0 0.0
    %153 = vmatprep.subr.mxu0 0.0
    %154 = vmatpush1.msra.mxu0 0.0
    %155 = vmatprep.subr.mxu0 0.0
    %156 = vmatpush1.msra.mxu0 0.0
    %157 = vmatprep.subr.mxu0 0.0
    %158 = vmatpush1.msra.mxu0 0.0
    %159 = vmatprep.subr.mxu0 0.0
    %160 = vmatpush1.msra.mxu0 0.0
    %161 = vmatprep.subr.mxu0 0.0
    %162 = vmatpush1.msra.mxu0 0.0
    %163 = vmatprep.subr.mxu0 0.0
    %164 = vmatpush1.msra.mxu0 0.0
    %165 = vmatprep.subr.mxu0 0.0
    %166 = vmatpush1.msra.mxu0 0.0
    %167 = vmatprep.subr.mxu0 0.0
    %168 = vmatpush1.msra.mxu0 0.0
    %169 = vmatprep.subr.mxu0 0.0
    %170 = vmatpush1.msra.mxu0 0.0
    %171 = vmatprep.subr.mxu0 0.0
    %172 = vmatpush1.msra.mxu0 0.0
    %173 = vmatprep.subr.mxu0 0.0
    %174 = vmatpush1.msra.mxu0 0.0
    %175 = vmatprep.mubr.f32.mxu0 0.0
    %176 = vmatmul.mubr.f32.gmra.mrb[0].mxu0 %v105
    %v177 = vpop.f32.mrb[0].mxu0
    %v178 = vadd.f32 %v100, %v177
    %v179 = vpop.f32.mrb[0].mxu0
    %180 = vdwg.mxu0
    %v181 = vld [vmem:[%s4] sm:$0x1]
    %v183 = vlaneseq
    %v184 = vshrl.u32 %v183, 7
    %v185 = vsub.s32 0, %v184
    %v186 = vrot.slane %v181, %v185
    %v188 = vadd.f32 %v178, %v186
    %vm189 = vcmask 523264
    %190 = vst.msk [vmem:[#allocation2] sm:$0xff] %vm189, %v188
    // Predicated region
    $region22: #{tpu_custom_call.1} parent=1 // pred_check
      _
    $region23: #{tpu_custom_call.1} parent=1 // pred_check_branch
      %192 = sbr.rel (0) target = $region25
    $region24: #{tpu_custom_call.1} parent=1 // pred_region
      %s194 = ssub.s32 128, 128
      %195 = vsyncadd [#allocation3], %s194
      %s197 = sshll.u32 [#allocation2], 4
      %s198 = int_to_ptr.vmem [resolvable:$true] %s197
      %200 = dma.vmem_to_hbm [thread:$0]  %s198, 128, %s5, [#allocation3]
    $region25: #{tpu_custom_call.1} parent=1 // pred_fallthru
      _
    // Predicated region
    $region26: #{tpu_custom_call.1} parent=1 // pred_check
      _
    $region27: #{tpu_custom_call.1} parent=1 // pred_check_branch
      %202 = sbr.rel (0) target = $region29
    $region28: #{tpu_custom_call.1} parent=1 // pred_region
      %203 = dma.done [#allocation3], 128
    $region29: #{tpu_custom_call.1} parent=1 // pred_fallthru
      _
    %204 = vsyncpa [#allocation3], 1

</llo_original>
